<compile_context>
chip_gen: v7x
topology: tpu7x:2x2x1
jax: 0.10.0
libtpu: 0.0.40
codegen_flags: <defaults>
</compile_context>

<pallas_src>
import jax
import jax.numpy as jnp
from jax.experimental import pallas as pl
from jax.experimental.pallas import tpu as pltpu

_LANES = 128


def _round_up(x, m):
    return (x + m - 1) // m * m


def _vmem_capacity_bytes():
    try:
        return int(pltpu.get_tpu_info().vmem_capacity_bytes)
    except Exception:
        return 64 * 1024 * 1024  # conservative fallback (v7x per-TC VMEM)


# ----------------------------------------------------------------------------
# Kernels
# ----------------------------------------------------------------------------
def _probe_kernel_resident(x_ref, w_ref, b_ref, o_ref):
    # x_ref: (tb, D) input dtype -- cast to the MXU compute dtype in-VMEM.
    # w_ref: (D, C_pad) compute dtype (fully resident; constant index_map).
    # b_ref: (1, C_pad) f32.   o_ref: (tb, C_pad) out dtype.
    x = x_ref[...].astype(w_ref.dtype)
    o_ref[...] = (
        jnp.dot(x, w_ref[...], preferred_element_type=jnp.float32) + b_ref[...]
    ).astype(o_ref.dtype)


def _probe_kernel_ktiled(x_ref, w_ref, b_ref, o_ref, acc_ref):
    # Used only when the weight cannot be fully VMEM-resident.
    # acc_ref: (tb, C_pad) f32 accumulator, resident across the K axis.
    k = pl.program_id(1)
    x = x_ref[...].astype(w_ref.dtype)
    part = jnp.dot(x, w_ref[...], preferred_element_type=jnp.float32)

    @pl.when(k == 0)
    def _():
        acc_ref[...] = part          # init with first partial (no zero pass)

    @pl.when(k > 0)
    def _():
        acc_ref[...] += part

    @pl.when(k == pl.num_programs(1) - 1)
    def _():
        o_ref[...] = (acc_ref[...] + b_ref[...]).astype(o_ref.dtype)


# ----------------------------------------------------------------------------
# Wrapper
# ----------------------------------------------------------------------------
def prepare_linear_probe_params(weight, bias, *, compute_dtype=jnp.bfloat16):
    """One-time parameter prep (call at module init, NOT per forward):
       transpose (C, D) -> (D, C), pad C to a multiple of 128 lanes,
       cast the weight to the MXU compute dtype, keep the bias in f32."""
    C, D = weight.shape
    c_pad = _round_up(C, _LANES)
    w_t = jnp.zeros((D, c_pad), dtype=compute_dtype)
    w_t = w_t.at[:, :C].set(weight.T.astype(compute_dtype))
    b2 = jnp.zeros((1, c_pad), dtype=jnp.float32)
    b2 = b2.at[:, :C].set(bias.astype(jnp.float32))
    return w_t, b2, C


def linear_probe_forward(image_features, w_t, b2, num_classes, *,
                         block_b=512, out_dtype=jnp.bfloat16,
                         vmem_budget_bytes=None):
    """image_features: (B, D); w_t/b2/num_classes from
    prepare_linear_probe_params.  Returns (B, num_classes) in out_dtype."""
    B, D = image_features.shape
    d_w, c_pad = w_t.shape
    assert d_w == D, "weight feature dim mismatch"

    in_item = jnp.dtype(image_features.dtype).itemsize
    w_item = jnp.dtype(w_t.dtype).itemsize
    out_item = jnp.dtype(out_dtype).itemsize

    vmem_cap = _vmem_capacity_bytes()
    vmem_limit = int(min(vmem_cap, max(32 * 1024 * 1024, vmem_cap * 3 // 4)))
    if vmem_budget_bytes is None:
        vmem_budget = max(24 * 1024 * 1024, vmem_cap * 3 // 4)
    else:
        vmem_budget = int(vmem_budget_bytes)

    # Batch tile: 16-sublane aligned (full bf16 vreg packing) except for tiny
    # batches.  Split moderate batches in >= 2 tiles so the "parallel" batch
    # axis can shard across TensorCores (v7x); one extra grid step is noise.
    align = 8 if B < 16 else 16
    tb = min(block_b, _round_up(B, align))
    if B >= 256 and pl.cdiv(B, tb) == 1:
        tb = _round_up(pl.cdiv(B, 2), align)

    def vmem_use(tb_, tk_, ktiled):
        use = 2 * tb_ * tk_ * in_item          # x double-buffer
        use += 2 * tk_ * c_pad * w_item        # weight buffers
        use += 2 * c_pad * 4                   # bias
        use += 2 * tb_ * c_pad * out_item      # out double-buffer
        if ktiled:
            use += tb_ * c_pad * 4             # f32 accumulator scratch
        return use

    # Prefer the weight fully VMEM-resident (nk == 1): it is then DMA'd from
    # HBM once for the whole call instead of once per batch tile.
    resident = vmem_use(tb, D, ktiled=False) <= vmem_budget
    if not resident:
        tb_try = tb
        while tb_try > 128:
            tb_try = max(128, _round_up(tb_try // 2, align))
            if vmem_use(tb_try, D, ktiled=False) <= vmem_budget:
                tb, resident = tb_try, True
                break

    if resident:
        tk, nk = D, 1
    else:
        divisors = [c for c in (512, 384, 256, 128) if D % c == 0]
        if not divisors:
            # TODO(synk): no lane-aligned divisor of D <= 512; weight stays
            # fully resident (compiler may spill) rather than ragged K blocks.
            tk = D
        else:
            fitting = [c for c in divisors if vmem_use(tb, c, True) <= vmem_budget]
            tk = fitting[0] if fitting else divisors[-1]
        nk = D // tk
    nb = pl.cdiv(B, tb)

    # Weight counted once when resident, once per batch tile when K-tiled.
    w_stream = (1 if nk == 1 else nb) * D * c_pad * w_item
    cost = pl.CostEstimate(
        flops=2 * B * D * c_pad,
        transcendentals=0,
        bytes_accessed=(B * D * in_item + w_stream + c_pad * 4
                        + B * c_pad * out_item),
    )

    if nk == 1:
        out = pl.pallas_call(
            _probe_kernel_resident,
            out_shape=jax.ShapeDtypeStruct((B, c_pad), out_dtype),
            grid_spec=pltpu.PrefetchScalarGridSpec(
                num_scalar_prefetch=0,
                grid=(nb,),
                in_specs=[
                    pl.BlockSpec((tb, D), lambda i: (i, 0)),
                    pl.BlockSpec((D, c_pad), lambda i: (0, 0)),   # resident
                    pl.BlockSpec((1, c_pad), lambda i: (0, 0)),
                ],
                out_specs=pl.BlockSpec((tb, c_pad), lambda i: (i, 0)),
            ),
            compiler_params=pltpu.CompilerParams(
                dimension_semantics=("parallel",),
                vmem_limit_bytes=vmem_limit,
            ),
            cost_estimate=cost,
        )(image_features, w_t, b2)
    else:
        out = pl.pallas_call(
            _probe_kernel_ktiled,
            out_shape=jax.ShapeDtypeStruct((B, c_pad), out_dtype),
            grid_spec=pltpu.PrefetchScalarGridSpec(
                num_scalar_prefetch=0,
                grid=(nb, nk),
                in_specs=[
                    pl.BlockSpec((tb, tk), lambda i, k: (i, k)),
                    pl.BlockSpec((tk, c_pad), lambda i, k: (k, 0)),
                    pl.BlockSpec((1, c_pad), lambda i, k: (0, 0)),
                ],
                out_specs=pl.BlockSpec((tb, c_pad), lambda i, k: (i, 0)),
                scratch_shapes=[pltpu.VMEM((tb, c_pad), jnp.float32)],
            ),
            compiler_params=pltpu.CompilerParams(
                dimension_semantics=("parallel", "arbitrary"),
                vmem_limit_bytes=vmem_limit,
            ),
            cost_estimate=cost,
        )(image_features, w_t, b2)

    # Slice the lane-padded class dim back to the true number of classes.
    return out[:, :num_classes]


if __name__ == "__main__":
    key = jax.random.PRNGKey(0)
    kx, kw, kb = jax.random.split(key, 3)

    # ---- Case 1: small shapes, weight fully VMEM-resident (nk == 1 path) ----
    # Module config: input_dim = text_encoder.output_dim, num_classes = len(class_names)
    B, D, C = 8, 32, 16
    image_features = jax.random.normal(kx, (B, D), dtype=jnp.float32)
    weight = jax.random.normal(kw, (C, D), dtype=jnp.float32) * 0.02  # nn.Linear weight (C, D)
    bias = jax.random.normal(kb, (C,), dtype=jnp.float32) * 0.01      # nn.Linear bias (C,)

    w_t, b2, num_classes = prepare_linear_probe_params(weight, bias)
    out = linear_probe_forward(image_features, w_t, b2, num_classes)
    out = jax.block_until_ready(out)
    assert out.shape == (B, C)

    # Kernel numerics: bf16 operands, f32 accumulate + f32 bias, bf16 out.
    ref_bf16 = (jnp.dot(image_features.astype(jnp.bfloat16),
                        weight.T.astype(jnp.bfloat16),
                        preferred_element_type=jnp.float32) + bias)
    assert jnp.allclose(out.astype(jnp.float32), ref_bf16, atol=1e-2, rtol=1e-2)
    # Semantic check vs the full-f32 PyTorch forward.
    ref_f32 = image_features @ weight.T + bias
    assert jnp.allclose(out.astype(jnp.float32), ref_f32, atol=5e-2, rtol=5e-2)

    # ---- Case 2: force the K-tiled accumulator path via a tiny VMEM budget ----
    D2 = 256
    x2 = jax.random.normal(kx, (B, D2), dtype=jnp.float32)
    w2 = jax.random.normal(kw, (C, D2), dtype=jnp.float32) * 0.02
    w2_t, b2_2, nc2 = prepare_linear_probe_params(w2, bias)
    out2 = linear_probe_forward(x2, w2_t, b2_2, nc2,
                                out_dtype=jnp.float32,
                                vmem_budget_bytes=1024)  # forces nk > 1
    out2 = jax.block_until_ready(out2)
    assert out2.shape == (B, C)
    ref2 = (jnp.dot(x2.astype(jnp.bfloat16), w2.T.astype(jnp.bfloat16),
                    preferred_element_type=jnp.float32) + bias)
    assert jnp.allclose(out2, ref2, atol=1e-4, rtol=1e-4)

    print("KERNEL_OK")
</pallas_src>

<mosaic_0001>
module attributes {stable_mosaic.version = 11 : i64} {
  func.func @_probe_kernel_resident(%arg0: i32, %arg1: memref<8x32xf32, #tpu.memory_space<vmem>>, %arg2: memref<32x128xbf16, #tpu.memory_space<vmem>>, %arg3: memref<1x128xf32, #tpu.memory_space<vmem>>, %arg4: memref<8x128xbf16, #tpu.memory_space<vmem>>) attributes {dimension_semantics = [#tpu.dimension_semantics<parallel>], iteration_bounds = array<i64: 1>, scalar_prefetch = 0 : i64, scratch_operands = 0 : i64, tpu.core_type = #tpu.core_type<tc>, window_params = [{transform_indices = @transform_0, window_bounds = array<i64: 8, 32>}, {pipeline_mode = #tpu.pipeline_mode<synchronous>, transform_indices = @transform_1, window_bounds = array<i64: 32, 128>}, {pipeline_mode = #tpu.pipeline_mode<synchronous>, transform_indices = @transform_2, window_bounds = array<i64: 1, 128>}, {transform_indices = @transform_3, window_bounds = array<i64: 8, 128>}]} {
    %c0 = arith.constant 0 : index
    %c0_0 = arith.constant 0 : index
    %0 = vector.load %arg1[%c0, %c0_0] : memref<8x32xf32, #tpu.memory_space<vmem>>, vector<8x32xf32>
    %1 = arith.truncf %0 : vector<8x32xf32> to vector<8x32xbf16>
    %c0_1 = arith.constant 0 : index
    %c0_2 = arith.constant 0 : index
    %2 = vector.load %arg2[%c0_1, %c0_2] : memref<32x128xbf16, #tpu.memory_space<vmem>>, vector<32x128xbf16>
    %cst = arith.constant dense<0.000000e+00> : vector<8x128xf32>
    %3 = tpu.matmul %1, %2, %cst {dimension_numbers = #tpu.dot_dimension_numbers<[1], [0], [0], [1], [0, 0, 1, 1], [], []>} : vector<8x32xbf16>, vector<32x128xbf16>, vector<8x128xf32> -> vector<8x128xf32>
    %c0_3 = arith.constant 0 : index
    %c0_4 = arith.constant 0 : index
    %4 = vector.load %arg3[%c0_3, %c0_4] : memref<1x128xf32, #tpu.memory_space<vmem>>, vector<1x128xf32>
    %5 = vector.broadcast %4 : vector<1x128xf32> to vector<8x128xf32>
    %6 = arith.addf %3, %5 : vector<8x128xf32>
    %7 = arith.truncf %6 : vector<8x128xf32> to vector<8x128xbf16>
    %c0_5 = arith.constant 0 : index
    %c0_6 = arith.constant 0 : index
    %8 = vector.load %arg4[%c0_5, %c0_6] : memref<8x128xbf16, #tpu.memory_space<vmem>>, vector<8x128xbf16>
    tpu.vector_store %arg4[%c0_5, %c0_6], %7 {strides = array<i32>} : memref<8x128xbf16, #tpu.memory_space<vmem>>, vector<8x128xbf16>,
    return
  }
  func.func @transform_0(%arg0: i32) -> (i32, i32) {
    %c0_i32 = arith.constant 0 : i32
    %c0_i32_0 = arith.constant 0 : i32
    return %arg0, %c0_i32 : i32, i32
  }
  func.func @transform_1(%arg0: i32) -> (i32, i32) {
    %c0_i32 = arith.constant 0 : i32
    %c0_i32_0 = arith.constant 0 : i32
    %c0_i32_1 = arith.constant 0 : i32
    return %c0_i32, %c0_i32_0 : i32, i32
  }
  func.func @transform_2(%arg0: i32) -> (i32, i32) {
    %c0_i32 = arith.constant 0 : i32
    %c0_i32_0 = arith.constant 0 : i32
    %c0_i32_1 = arith.constant 0 : i32
    return %c0_i32, %c0_i32_0 : i32, i32
  }
  func.func @transform_3(%arg0: i32) -> (i32, i32) {
    %c0_i32 = arith.constant 0 : i32
    %c0_i32_0 = arith.constant 0 : i32
    return %arg0, %c0_i32 : i32, i32
  }
}

</mosaic_0001>

<llo_original>
// kernel: tpu_custom_call.1
$region0: #{tpu_custom_call.1}
  #allocation0 [shape = 'u32[]', space=smem, size = 0x4, offset = 0x4, fixed_abs, tag = 'smem constant byte address 0x4 - core index']
  #allocation1 [shape = 'u32[144,128]{1,0:T(1,128)}', space=vmem, size = 0x12000, scoped, tag = 'internal scratch']
  %s0 = inlined_call_operand.hbm [shape: f32[8,32], index: 0, kind: input, shape index: {}]
  %s1 = inlined_call_operand.hbm [shape: bf16[32,128], index: 1, kind: input, shape index: {}]
  %s2 = inlined_call_operand.vmem [shape: f32[1,128], index: 2, kind: input, shape index: {}]
  %s3 = inlined_call_operand.hbm [shape: bf16[8,128], index: 3, kind: output, shape index: {}]
  %s4 = sld [smem:[#allocation0]]
  $region30: #{tpu_custom_call.1} parent=0
    _
  %s6 = ssub.s32 1, %s4
  %s7 = scalar_select 0, %s6, %s4
  $region1: #{tpu_custom_call.1} parent=0
    #allocation2 [shape = 'u8[4096]{0}', space=vmem, size = 0x1000, scoped, tag = 'input window, operand 0, single buffered']
    #allocation3 [shape = 's32[1]{0}', space=sflag, size = 0x4, scoped, tag = 'scoped memory for tpu_custom_call.1']
    #allocation4 [shape = 's32[1]{0}', space=sflag, size = 0x4, scoped, tag = 'scoped memory for tpu_custom_call.1']
    #allocation5 [shape = 'u8[8192]{0}', space=vmem, size = 0x2000, scoped, tag = 'input window, operand 1, single buffered']
    #allocation6 [shape = 's32[1]{0}', space=sflag, size = 0x4, scoped, tag = 'scoped memory for tpu_custom_call.1']
    #allocation7 [shape = 'u8[2048]{0}', space=vmem, size = 0x800, scoped, tag = 'output window, operand 0, single buffered']
    %8 = vsyncpa [#allocation3], 0
    %9 = vsyncpa [#allocation6], 0
    %10 = vsyncpa [#allocation4], 0
    // Predicated region
    $region2: #{tpu_custom_call.1} parent=1 // pred_check
      _
    $region3: #{tpu_custom_call.1} parent=1 // pred_check_branch
      %12 = sbr.rel (0) target = $region5
    $region4: #{tpu_custom_call.1} parent=1 // pred_region
      %s14 = ssub.s32 128, 128
      %15 = vsyncadd [#allocation3], %s14
      %s17 = sshll.u32 [#allocation2], 4
      %s18 = int_to_ptr.vmem [resolvable:$true] %s17
      %20 = dma.hbm_to_vmem [thread:$0]  %s0, 128, %s18, [#allocation3]
    $region5: #{tpu_custom_call.1} parent=1 // pred_fallthru
      _
    // Predicated region
    $region6: #{tpu_custom_call.1} parent=1 // pred_check
      _
    $region7: #{tpu_custom_call.1} parent=1 // pred_check_branch
      %22 = sbr.rel (0) target = $region9
    $region8: #{tpu_custom_call.1} parent=1 // pred_region
      %s24 = ssub.s32 256, 256
      %25 = vsyncadd [#allocation6], %s24
      %s26 = sshll.u32 [#allocation5], 4
      %s27 = int_to_ptr.vmem [resolvable:$true] %s26
      %32 = dma.hbm_to_vmem [thread:$0]  %s1, 256, %s27, [#allocation6], 64, 64, 4
    $region9: #{tpu_custom_call.1} parent=1 // pred_fallthru
      _
    // Predicated region
    $region10: #{tpu_custom_call.1} parent=1 // pred_check
      _
    $region11: #{tpu_custom_call.1} parent=1 // pred_check_branch
      %34 = sbr.rel (0) target = $region13
    $region12: #{tpu_custom_call.1} parent=1 // pred_region
      _
    $region13: #{tpu_custom_call.1} parent=1 // pred_fallthru
      _
    // Predicated region
    $region14: #{tpu_custom_call.1} parent=1 // pred_check
      _
    $region15: #{tpu_custom_call.1} parent=1 // pred_check_branch
      %36 = sbr.rel (0) target = $region17
    $region16: #{tpu_custom_call.1} parent=1 // pred_region
      %37 = dma.done [#allocation3], 128
    $region17: #{tpu_custom_call.1} parent=1 // pred_fallthru
      _
    // Predicated region
    $region18: #{tpu_custom_call.1} parent=1 // pred_check
      _
    $region19: #{tpu_custom_call.1} parent=1 // pred_check_branch
      %39 = sbr.rel (0) target = $region21
    $region20: #{tpu_custom_call.1} parent=1 // pred_region
      %40 = dma.done [#allocation6], 256
    $region21: #{tpu_custom_call.1} parent=1 // pred_fallthru
      _
    %v42 = vld [vmem:[#allocation2] sm:$0xff]
    %v43 = vpack.c.bf16 %v42, %v42
    %v44 = vld [vmem:[#allocation5] sm:$0xf]
    %v45 = vld [vmem:[#allocation5 + $0x4] sm:$0xf]
    %v46 = vld [vmem:[#allocation5 + $0x8] sm:$0xf]
    %v47 = vld [vmem:[#allocation5 + $0xc] sm:$0xf]
    %v48 = vld [vmem:[%s2] sm:$0x1]
    %v50 = vlaneseq
    %v51 = vshrl.u32 %v50, 7
    %v52 = vsub.s32 0, %v51
    %v53 = vrot.slane %v48, %v52
    %v59 = vunpack.c.l.b16 %v44
    %v60 = vunpack.c.l.b16 %v45
    %v61 = vunpack.c.l.b16 %v46
    %v62 = vunpack.c.l.b16 %v47
    %v63 = vpack.c.b16 %v60, %v59
    %v64 = vpack.c.b16 %v62, %v61
    %vm67 = vcmask 261120
    %v69 = vsel %vm67, %v43, 0
    %71 = vmatprep.subr.bf16.mxu0 0
    %72 = vmatpush1.bf16.msra.mxu0 %v63
    %73 = vmatprep.subr.bf16.mxu0 0
    %74 = vmatpush1.bf16.msra.mxu0 %v64
    %75 = vmatprep.subr.bf16.mxu0 0
    %76 = vmatpush1.bf16.msra.mxu0 0
    %77 = vmatprep.subr.bf16.mxu0 0
    %78 = vmatpush1.bf16.msra.mxu0 0
    %79 = vmatprep.subr.bf16.mxu0 0
    %80 = vmatpush1.bf16.msra.mxu0 0
    %81 = vmatprep.subr.bf16.mxu0 0
    %82 = vmatpush1.bf16.msra.mxu0 0
    %83 = vmatprep.subr.bf16.mxu0 0
    %84 = vmatpush1.bf16.msra.mxu0 0
    %85 = vmatprep.subr.bf16.mxu0 0
    %86 = vmatpush1.bf16.msra.mxu0 0
    %87 = vmatprep.subr.bf16.mxu0 0
    %88 = vmatpush1.bf16.msra.mxu0 0
    %89 = vmatprep.subr.bf16.mxu0 0
    %90 = vmatpush1.bf16.msra.mxu0 0
    %91 = vmatprep.subr.bf16.mxu0 0
    %92 = vmatpush1.bf16.msra.mxu0 0
    %93 = vmatprep.subr.bf16.mxu0 0
    %94 = vmatpush1.bf16.msra.mxu0 0
    %95 = vmatprep.subr.bf16.mxu0 0
    %96 = vmatpush1.bf16.msra.mxu0 0
    %97 = vmatprep.subr.bf16.mxu0 0
    %98 = vmatpush1.bf16.msra.mxu0 0
    %99 = vmatprep.subr.bf16.mxu0 0
    %100 = vmatpush1.bf16.msra.mxu0 0
    %101 = vmatprep.subr.bf16.mxu0 0
    %102 = vmatpush1.bf16.msra.mxu0 0
    %103 = vmatprep.mubr.bf16.mxu0 0
    %104 = vmatmul.mubr.bf16.gmra.mrb[0].mxu0 %v69
    %v105 = vpop.f32.mrb[0].mxu0
    %v106 = vadd.f32 %v53, %v105
    %v107 = vpop.f32.mrb[0].mxu0
    %v108 = vpop.f32.mrb[0].mxu0
    %v109 = vpop.f32.mrb[0].mxu0
    %110 = vdwg.mxu0
    %v111 = vpack.c.bf16 %v106, %v106
    %112 = vst [vmem:[#allocation7] sm:$0xf] %v111
    // Predicated region
    $region22: #{tpu_custom_call.1} parent=1 // pred_check
      _
    $region23: #{tpu_custom_call.1} parent=1 // pred_check_branch
      %114 = sbr.rel (0) target = $region25
    $region24: #{tpu_custom_call.1} parent=1 // pred_region
      %s116 = ssub.s32 64, 64
      %117 = vsyncadd [#allocation4], %s116
      %s119 = sshll.u32 [#allocation7], 4
      %s120 = int_to_ptr.vmem [resolvable:$true] %s119
      %122 = dma.vmem_to_hbm [thread:$0]  %s120, 64, %s3, [#allocation4]
    $region25: #{tpu_custom_call.1} parent=1 // pred_fallthru
      _
    // Predicated region
    $region26: #{tpu_custom_call.1} parent=1 // pred_check
      _
    $region27: #{tpu_custom_call.1} parent=1 // pred_check_branch
      %124 = sbr.rel (0) target = $region29
    $region28: #{tpu_custom_call.1} parent=1 // pred_region
      %125 = dma.done [#allocation4], 64
    $region29: #{tpu_custom_call.1} parent=1 // pred_fallthru
      _
    %126 = vsyncpa [#allocation3], 1
    %127 = vsyncpa [#allocation6], 1
    %128 = vsyncpa [#allocation4], 1

</llo_original>
